<compile_context>
chip_gen: v5e
topology: v5e:2x2
jax: 0.10.0
libtpu: 0.0.40
codegen_flags: <defaults>
</compile_context>

<pallas_src>
import re

import jax
import jax.numpy as jnp
from jax.experimental import pallas as pl
from jax.experimental.pallas import tpu as pltpu


def _ss_tanh_kernel(s1_ref, x_ref, o_ref):
    # s1_ref: (1, 1) f32 in SMEM holding (1 + scale)
    # x_ref / o_ref: (tile_rows, W) tiles in VMEM, native dtype
    s1 = s1_ref[0, 0]
    x = x_ref[...].astype(jnp.float32)                    # tanh in f32 (EUP)
    o_ref[...] = (s1 * jnp.tanh(x)).astype(o_ref.dtype)   # single VPU mul


def _tpu_generation():
    try:
        kind = jax.devices()[0].device_kind
    except Exception:
        return 0
    m = re.search(r"(\d+)", kind)
    return int(m.group(1)) if m else 0


def _hw_defaults():
    """(target_block_bytes, vmem_limit_bytes) per TPU generation."""
    gen = _tpu_generation()
    if gen >= 7:
        # v7x: 3.2 TB/s HBM makes the ~0.35 us per-step overhead expensive ->
        # bigger blocks; but only 64 MiB physical VMEM -> cap scoped limit.
        return 4 * 1024 * 1024, 48 * 1024 * 1024
    if gen == 6:
        # v6e: 128 MiB VMEM; 4 MiB blocks are ~1-2% better than 1-2 MiB.
        return 4 * 1024 * 1024, 64 * 1024 * 1024
    # v5e / older / unknown: conservative.
    return 2 * 1024 * 1024, 32 * 1024 * 1024


_SMALL_SINGLE_BLOCK_BYTES = 256 * 1024   # below this one block beats pipelining


def _sublane_multiple(dtype):
    # Sub-32-bit dtypes pack 2/4 rows per sublane: keep tile_rows a multiple of
    # the packing factor (8 f32, 16 bf16/f16, 32 int8/fp8) to avoid masked /
    # awkward packed-row layouts in every block.
    return 8 * max(1, 4 // jnp.dtype(dtype).itemsize)


def _choose_tile_rows(rows, row_bytes, sub, target_block_bytes, total_bytes):
    if rows <= sub:
        return rows                       # block == full dim: always legal
    # Byte-budget target, floored to the sublane multiple.
    t = max(sub, (target_block_bytes // row_bytes) // sub * sub)
    # Keep >= ~4 grid steps for non-trivial arrays so double buffering hides
    # the DMA and v7x's two TensorCores both get (balanced) work.
    if total_bytes > _SMALL_SINGLE_BLOCK_BYTES:
        cap = max(sub, (pl.cdiv(rows, 4) // sub) * sub)
        t = min(t, cap)
    t = min(t, rows)
    if rows % t == 0:
        return t
    # Prefer a tile_rows that divides rows exactly (no ragged trailing block);
    # search nearby sublane-aligned candidates, shrinking at most ~2x.
    lo = max(sub, ((t // 2) // sub) * sub)
    c = (t // sub) * sub
    while c >= lo:
        if rows % c == 0:
            return c
        c -= sub
    return max(sub, (t // sub) * sub)     # ragged trailing block (masked store)


def self_scalable_tanh(x, scale, *, target_block_bytes=None):
    """Elementwise tanh(x) + scale * tanh(x). Any shape, native-dtype I/O."""
    orig_shape = x.shape
    dtype = x.dtype
    total = x.size
    if total == 0:
        return x

    auto_block, vmem_limit = _hw_defaults()
    if target_block_bytes is None:
        target_block_bytes = auto_block

    # Fold the algebra once: tanh(x) + scale*tanh(x) == (1 + scale) * tanh(x).
    s1 = (jnp.asarray(scale, dtype=jnp.float32) + 1.0).reshape(1, 1)

    # Flatten; pad odd sizes up to a multiple of 1024 (8x128) so every input
    # goes through the same lane-dense streaming path (never a (1,total) block).
    flat = x.reshape(-1)
    if total % 128 != 0:
        padded_total = ((total + 1023) // 1024) * 1024
        flat = jnp.pad(flat, (0, padded_total - total))
    else:
        padded_total = total

    # Lane-dense row width W (multiple of 128) that divides the flat size.
    W = 128
    for cand in (4096, 2048, 1024, 512, 256):
        if padded_total % cand == 0:
            W = cand
            break

    rows = padded_total // W
    x2 = flat.reshape(rows, W)

    itemsize = jnp.dtype(dtype).itemsize
    row_bytes = W * itemsize
    total_bytes = padded_total * itemsize
    sub = _sublane_multiple(dtype)

    if total_bytes <= min(_SMALL_SINGLE_BLOCK_BYTES, target_block_bytes):
        tile_rows = rows                  # tiny array: one exact block
    else:
        tile_rows = _choose_tile_rows(rows, row_bytes, sub,
                                       target_block_bytes, total_bytes)

    grid = (pl.cdiv(rows, tile_rows),)

    out = pl.pallas_call(
        _ss_tanh_kernel,
        out_shape=jax.ShapeDtypeStruct((rows, W), dtype),
        grid=grid,
        in_specs=[
            pl.BlockSpec(memory_space=pltpu.SMEM),           # (1 + scale)
            pl.BlockSpec((tile_rows, W), lambda i: (i, 0)),  # x tile
        ],
        out_specs=pl.BlockSpec((tile_rows, W), lambda i: (i, 0)),
        compiler_params=pltpu.CompilerParams(
            # Single axis marked parallel -> v7x megacore shards the grid;
            # on single-TC chips it is a no-op.
            dimension_semantics=("parallel",),
            vmem_limit_bytes=vmem_limit,
        ),
        cost_estimate=pl.CostEstimate(
            flops=2 * padded_total,
            transcendentals=padded_total,
            bytes_accessed=2 * padded_total * itemsize,
        ),
    )(s1, x2)

    out = out.reshape(-1)
    if padded_total != total:
        out = out[:total]
    return out.reshape(orig_shape)


def self_scalable_tanh_ref(x, scale):
    t = jnp.tanh(x.astype(jnp.float32))
    return (t + scale * t).astype(x.dtype)


if __name__ == "__main__":
    keys = jax.random.split(jax.random.PRNGKey(0), 5)
    init_scale = jnp.float32(0.1)   # deterministic parameter init (init_scale=0.1)

    # Main test: NCHW input matching the PyTorch module's typical usage.
    x = jax.random.normal(keys[0], (2, 4, 16, 16), dtype=jnp.float32)
    y = jax.block_until_ready(self_scalable_tanh(x, init_scale))
    assert y.shape == x.shape and y.dtype == x.dtype
    assert jnp.allclose(y, self_scalable_tanh_ref(x, init_scale),
                        atol=1e-6, rtol=1e-6)

    # Tiled path with a ragged trailing block (rows=25, tile_rows=8 -> grid 4).
    x2 = jax.random.normal(keys[1], (1, 1, 100, 512), dtype=jnp.float32)
    y2 = jax.block_until_ready(
        self_scalable_tanh(x2, init_scale, target_block_bytes=64 * 1024))
    assert jnp.allclose(y2, self_scalable_tanh_ref(x2, init_scale),
                        atol=1e-6, rtol=1e-6)

    # Element count not a multiple of 128 -> padded streaming path.
    x3 = jax.random.normal(keys[2], (3, 5, 7), dtype=jnp.float32)
    y3 = jax.block_until_ready(self_scalable_tanh(x3, init_scale))
    assert jnp.allclose(y3, self_scalable_tanh_ref(x3, init_scale),
                        atol=1e-6, rtol=1e-6)

    # Medium f32 array (>256 KiB) -> >=4 grid steps, exact-divisor tiling.
    x4 = jax.random.normal(keys[3], (8, 16, 32, 64), dtype=jnp.float32)
    y4 = jax.block_until_ready(self_scalable_tanh(x4, init_scale))
    assert jnp.allclose(y4, self_scalable_tanh_ref(x4, init_scale),
                        atol=1e-6, rtol=1e-6)

    # bf16 input -> 16-row sublane packing multiple, native-dtype HBM I/O.
    x5 = jax.random.normal(keys[4], (4, 16, 32, 128), dtype=jnp.bfloat16)
    y5 = jax.block_until_ready(self_scalable_tanh(x5, init_scale))
    assert y5.dtype == jnp.bfloat16
    assert jnp.allclose(y5.astype(jnp.float32),
                        self_scalable_tanh_ref(x5, init_scale).astype(jnp.float32),
                        atol=1e-2, rtol=1e-2)

    print("KERNEL_OK")
</pallas_src>

<mosaic_0001>
module attributes {stable_mosaic.version = 11 : i64} {
  func.func @_ss_tanh_kernel(%arg0: i32, %arg1: memref<1x1xf32, #tpu.memory_space<smem>>, %arg2: memref<1x2048xf32, #tpu.memory_space<vmem>>, %arg3: memref<1x2048xf32, #tpu.memory_space<vmem>>) attributes {dimension_semantics = [#tpu.dimension_semantics<parallel>], iteration_bounds = array<i64: 1>, scalar_prefetch = 0 : i64, scratch_operands = 0 : i64, tpu.core_type = #tpu.core_type<tc>, window_params = [{transform_indices = @transform_0, window_bounds = array<i64: 1, 1>}, {transform_indices = @transform_1, window_bounds = array<i64: 1, 2048>}, {transform_indices = @transform_2, window_bounds = array<i64: 1, 2048>}]} {
    %c0 = arith.constant 0 : index
    %c0_0 = arith.constant 0 : index
    %0 = memref.load %arg1[%c0, %c0_0] : memref<1x1xf32, #tpu.memory_space<smem>>
    %c0_1 = arith.constant 0 : index
    %c0_2 = arith.constant 0 : index
    %1 = vector.load %arg2[%c0_1, %c0_2] : memref<1x2048xf32, #tpu.memory_space<vmem>>, vector<1x2048xf32>
    %2 = math.tanh %1 : vector<1x2048xf32>
    %3 = vector.broadcast %0 : f32 to vector<1x2048xf32>
    %4 = arith.mulf %3, %2 : vector<1x2048xf32>
    %c0_3 = arith.constant 0 : index
    %c0_4 = arith.constant 0 : index
    %5 = vector.load %arg3[%c0_3, %c0_4] : memref<1x2048xf32, #tpu.memory_space<vmem>>, vector<1x2048xf32>
    tpu.vector_store %arg3[%c0_3, %c0_4], %4 {strides = array<i32>} : memref<1x2048xf32, #tpu.memory_space<vmem>>, vector<1x2048xf32>,
    return
  }
  func.func @transform_0(%arg0: i32) -> (i32, i32) {
    %c0_i32 = arith.constant 0 : i32
    %c0_i32_0 = arith.constant 0 : i32
    %c0_i32_1 = arith.constant 0 : i32
    return %c0_i32, %c0_i32_0 : i32, i32
  }
  func.func @transform_1(%arg0: i32) -> (i32, i32) {
    %c0_i32 = arith.constant 0 : i32
    %c0_i32_0 = arith.constant 0 : i32
    return %arg0, %c0_i32 : i32, i32
  }
  func.func @transform_2(%arg0: i32) -> (i32, i32) {
    %c0_i32 = arith.constant 0 : i32
    %c0_i32_0 = arith.constant 0 : i32
    return %arg0, %c0_i32 : i32, i32
  }
}

</mosaic_0001>

<llo_original>
// kernel: tpu_custom_call.1
$region0: #{tpu_custom_call.1}
  #allocation0 [shape = 'u32[]', space=smem, size = 0x4, offset = 0x4, fixed_abs, tag = 'smem constant byte address 0x4 - core index']
  #allocation1 [shape = 'u32[72,128]{1,0:T(1,128)}', space=vmem, size = 0x9000, scoped, tag = 'internal scratch']
  #allocation2 [shape = 'f32[1,1]{1,0:T(1,128)S(6)}', space=smem, size = 0x200, scoped, tag = 'scoped memory for tpu_custom_call.1']
  %s0 = inlined_call_operand.<no memory space> [shape: f32[1,1], index: 0, kind: input, shape index: {}]
  %s1 = inlined_call_operand.hbm [shape: f32[1,2048], index: 1, kind: input, shape index: {}]
  %s2 = inlined_call_operand.hbm [shape: f32[1,2048], index: 2, kind: output, shape index: {}]
  %s3 = sld [smem:[#allocation0]]
  $region22: #{tpu_custom_call.1} parent=0
    _
  %s5 = ssub.s32 1, %s3
  %s6 = scalar_select 0, %s5, %s3
  %7 = sst [smem:[#allocation2]] %s0
  $region1: #{tpu_custom_call.1} parent=0
    #allocation3 [shape = 'u8[8192]{0}', space=vmem, size = 0x2000, scoped, tag = 'input window, operand 1, single buffered']
    #allocation4 [shape = 's32[1]{0}', space=sflag, size = 0x4, scoped, tag = 'scoped memory for tpu_custom_call.1']
    #allocation5 [shape = 's32[1]{0}', space=sflag, size = 0x4, scoped, tag = 'scoped memory for tpu_custom_call.1']
    #allocation6 [shape = 'u8[8192]{0}', space=vmem, size = 0x2000, scoped, tag = 'output window, operand 0, single buffered']
    %8 = vsyncpa [#allocation4], 0
    %9 = vsyncpa [#allocation5], 0
    // Predicated region
    $region2: #{tpu_custom_call.1} parent=1 // pred_check
      _
    $region3: #{tpu_custom_call.1} parent=1 // pred_check_branch
      %11 = sbr.rel (0) target = $region5
    $region4: #{tpu_custom_call.1} parent=1 // pred_region
      _
    $region5: #{tpu_custom_call.1} parent=1 // pred_fallthru
      _
    // Predicated region
    $region6: #{tpu_custom_call.1} parent=1 // pred_check
      _
    $region7: #{tpu_custom_call.1} parent=1 // pred_check_branch
      %13 = sbr.rel (0) target = $region9
    $region8: #{tpu_custom_call.1} parent=1 // pred_region
      %15 = vsyncadd [#allocation4], 0
      %s17 = sshll.u32 %s1, 4
      %s18 = int_to_ptr.hbm [resolvable:$true] %s17
      %s19 = sshll.u32 [#allocation3], 4
      %s20 = int_to_ptr.vmem [resolvable:$true] %s19
      %22 = dma.hbm_to_vmem [thread:$0]  %s18, 256, %s20, [#allocation4]
    $region9: #{tpu_custom_call.1} parent=1 // pred_fallthru
      _
    // Predicated region
    $region10: #{tpu_custom_call.1} parent=1 // pred_check
      _
    $region11: #{tpu_custom_call.1} parent=1 // pred_check_branch
      %24 = sbr.rel (0) target = $region13
    $region12: #{tpu_custom_call.1} parent=1 // pred_region
      %26 = dma.done [#allocation4], 256
    $region13: #{tpu_custom_call.1} parent=1 // pred_fallthru
      _
    %s27 = sld [smem:[#allocation2]]
    %v28 = vld [vmem:[#allocation3] sm:$0xff]
    %v29 = vld [vmem:[#allocation3 + $0x8] sm:$0xff]
    %v30 = vtanh.pop %v28
    %v31 = vtanh.pop %v29
    %v32 = vstv %s27
    %v33 = vmul.f32 %v32, %v30
    %v34 = vmul.f32 %v32, %v31
    %35 = vst [vmem:[#allocation6] sm:$0xff] %v33
    %36 = vst [vmem:[#allocation6 + $0x8] sm:$0xff] %v34
    // Predicated region
    $region14: #{tpu_custom_call.1} parent=1 // pred_check
      _
    $region15: #{tpu_custom_call.1} parent=1 // pred_check_branch
      %38 = sbr.rel (0) target = $region17
    $region16: #{tpu_custom_call.1} parent=1 // pred_region
      %40 = vsyncadd [#allocation5], 0
      %s42 = sshll.u32 [#allocation6], 4
      %s43 = int_to_ptr.vmem [resolvable:$true] %s42
      %s44 = sshll.u32 %s2, 4
      %s45 = int_to_ptr.hbm [resolvable:$true] %s44
      %47 = dma.vmem_to_hbm [thread:$0]  %s43, 256, %s45, [#allocation5]
    $region17: #{tpu_custom_call.1} parent=1 // pred_fallthru
      _
    // Predicated region
    $region18: #{tpu_custom_call.1} parent=1 // pred_check
      _
    $region19: #{tpu_custom_call.1} parent=1 // pred_check_branch
      %49 = sbr.rel (0) target = $region21
    $region20: #{tpu_custom_call.1} parent=1 // pred_region
      %51 = dma.done [#allocation5], 256
    $region21: #{tpu_custom_call.1} parent=1 // pred_fallthru
      _
    %52 = vsyncpa [#allocation4], 1
    %53 = vsyncpa [#allocation5], 1

</llo_original>
